<compile_context>
chip_gen: v5e
topology: v5e:2x2
jax: 0.10.0
libtpu: 0.0.40
codegen_flags: <defaults>
</compile_context>

<pallas_src>
import jax
import jax.numpy as jnp
from jax.experimental import pallas as pl
from jax.experimental.pallas import tpu as pltpu

SCALE = 4


def _bilinear_matrix(n_in: int, scale: int = SCALE) -> jnp.ndarray:
    """(n_out, n_in) 1-D interpolation matrix matching PyTorch bilinear upsample
    with align_corners=False (half-pixel centers, edge clamping baked in)."""
    n_out = n_in * scale
    i = jnp.arange(n_out, dtype=jnp.float32)
    src = jnp.maximum((i + 0.5) / scale - 0.5, 0.0)
    i0 = jnp.minimum(jnp.floor(src).astype(jnp.int32), n_in - 1)
    i1 = jnp.minimum(i0 + 1, n_in - 1)
    frac = src - i0.astype(jnp.float32)
    rows = jnp.arange(n_out)
    a = jnp.zeros((n_out, n_in), jnp.float32)
    a = a.at[rows, i0].add(1.0 - frac)
    a = a.at[rows, i1].add(frac)          # i1 == i0 at the right edge -> weights sum to 1
    return a


def _row_group(ho: int, wo: int) -> int:
    """Smallest G with G | Ho and (G*Wo) % 128 == 0 so output stores are lane-dense."""
    if wo % 128 == 0:
        return 1
    for g in (2, 4, 8, 16, 32):
        if ho % g == 0 and (g * wo) % 128 == 0:
            return g
    return 1   # fallback: masked stores (still correct)


def _upsample4_kernel(w_ref, x_ref, ah_ref, awt_ref, o_ref):
    # w_ref  : (C, C)              SMEM   1x1-conv weight (scalar reads)
    # x_ref  : (1, C, H, W)        VMEM   one batch of the input
    # ah_ref : (G, Ho//G, H)       VMEM   height-interp matrix, rows g::G in slab g
    # awt_ref: (W, Wo)             VMEM   width-interp matrix (transposed)
    # o_ref  : (1, C, Ho//G, G*Wo) VMEM   lane-dense output slab
    C, H = x_ref.shape[1], x_ref.shape[2]
    G = ah_ref.shape[0]
    idt = ah_ref.dtype                       # interp/matmul operand dtype (f32 or bf16)

    x = x_ref[0].astype(jnp.float32)         # (C, H, W)

    # ---- 1x1 conv (channel mix), commuted in front of the upsample. --------
    # Small C: C*C broadcast-scalar FMAs on the VPU instead of an underfilled
    # MXU matmul; weights come from SMEM scalars.
    mixed = []
    for o in range(C):
        acc = w_ref[o, 0] * x[0]
        for c in range(1, C):
            acc = acc + w_ref[o, c] * x[c]
        mixed.append(acc)                    # (H, W) f32
    m2 = jnp.concatenate(mixed, axis=0)      # (C*H, W)  sublane concat (H % 8 == 0)

    # ---- Width interpolation, batched over all channels (one matmul). ------
    t = jnp.dot(m2.astype(idt), awt_ref[...],
                preferred_element_type=jnp.float32)       # (C*H, Wo) f32
    t = t.astype(idt)

    # ---- Height interpolation, per channel, lane-dense output. -------------
    # ah_ref[g] holds rows g::G of A_h, so concatenating the G partial results
    # along the lane axis gives the row-major (Ho//G, G*Wo) slab == flattened
    # (Ho, Wo) tile -> full-width unmasked stores.
    for o in range(C):
        t_c = t[o * H:(o + 1) * H, :]                                 # (H, Wo)
        parts = [jnp.dot(ah_ref[g], t_c, preferred_element_type=jnp.float32)
                 for g in range(G)]                                   # (Ho//G, Wo) each
        y = parts[0] if G == 1 else jnp.concatenate(parts, axis=1)    # (Ho//G, G*Wo)
        o_ref[0, o] = y.astype(o_ref.dtype)


def upsample4(x, conv_w):
    """x: (B, C, H, W) NCHW.  conv_w: (C, C) == Conv2d(C, C, 1, bias=False).weight[:, :, 0, 0]."""
    B, C, H, W = x.shape
    Ho, Wo = SCALE * H, SCALE * W
    G = _row_group(Ho, Wo)

    # bf16 inputs keep bf16 matmul operands (exact for the 4x interp weights);
    # f32 stays f32.  Accumulation is always f32.
    idt = jnp.bfloat16 if x.dtype == jnp.bfloat16 else jnp.float32
    ah = _bilinear_matrix(H).astype(idt)                          # (Ho, H)
    ah_stack = jnp.stack([ah[g::G] for g in range(G)], axis=0)    # (G, Ho//G, H)
    awt = _bilinear_matrix(W).T.astype(idt)                       # (W, Wo)

    out = pl.pallas_call(
        _upsample4_kernel,
        out_shape=jax.ShapeDtypeStruct((B, C, Ho // G, G * Wo), x.dtype),
        grid=(B,),
        in_specs=[
            pl.BlockSpec(memory_space=pltpu.MemorySpace.SMEM),      # conv_w
            pl.BlockSpec((1, C, H, W), lambda b: (b, 0, 0, 0)),     # x
            pl.BlockSpec((G, Ho // G, H), lambda b: (0, 0, 0)),     # ah_stack (constant)
            pl.BlockSpec((W, Wo), lambda b: (0, 0)),                # awt (constant)
        ],
        out_specs=pl.BlockSpec((1, C, Ho // G, G * Wo), lambda b: (b, 0, 0, 0)),
        compiler_params=pltpu.CompilerParams(
            dimension_semantics=("parallel",)),                     # B=2 steps -> both TCs
    )(conv_w, x, ah_stack, awt)

    # (B, C, Ho//G, G*Wo) -> (B, C, Ho, Wo): contiguous row-major reshape, free.
    return out.reshape(B, C, Ho, Wo)


def upsample4_reference(x, conv_w):
    """Pure-JAX mirror of nn.Upsample(scale=4, bilinear, align_corners=False) -> 1x1 conv (no bias)."""
    B, C, H, W = x.shape

    def idx(n_in):
        n_out = SCALE * n_in
        i = jnp.arange(n_out, dtype=jnp.float32)
        src = jnp.maximum((i + 0.5) / SCALE - 0.5, 0.0)
        i0 = jnp.minimum(jnp.floor(src).astype(jnp.int32), n_in - 1)
        i1 = jnp.minimum(i0 + 1, n_in - 1)
        f = src - i0.astype(jnp.float32)
        return i0, i1, f

    h0, h1, fh = idx(H)
    w0, w1, fw = idx(W)
    xf = x.astype(jnp.float32)
    rows = (xf[:, :, h0, :] * (1.0 - fh)[None, None, :, None]
            + xf[:, :, h1, :] * fh[None, None, :, None])
    up = rows[:, :, :, w0] * (1.0 - fw) + rows[:, :, :, w1] * fw
    out = jnp.einsum('oc,bchw->bohw', conv_w.astype(jnp.float32), up)
    return out.astype(x.dtype)


if __name__ == "__main__":
    B, C, H, W = 2, 4, 16, 16
    key = jax.random.PRNGKey(0)
    kx, kw = jax.random.split(key)
    x = jax.random.normal(kx, (B, C, H, W), dtype=jnp.float32)
    # 1x1 conv weight (no bias), squeezed to 2-D.
    conv_w = jax.random.normal(kw, (C, C), dtype=jnp.float32) * 0.1

    out = upsample4(x, conv_w)
    out = jax.block_until_ready(out)

    ref = upsample4_reference(x, conv_w)
    assert out.shape == (B, C, SCALE * H, SCALE * W)
    assert jnp.allclose(out, ref, atol=1e-4, rtol=1e-4), "mismatch vs reference"
    print("KERNEL_OK")
</pallas_src>

<mosaic_0001>
module attributes {stable_mosaic.version = 11 : i64} {
  func.func @_upsample4_kernel(%arg0: i32, %arg1: memref<4x4xf32, #tpu.memory_space<smem>>, %arg2: memref<1x4x16x16xf32, #tpu.memory_space<vmem>>, %arg3: memref<2x32x16xf32, #tpu.memory_space<vmem>>, %arg4: memref<16x64xf32, #tpu.memory_space<vmem>>, %arg5: memref<1x4x32x128xf32, #tpu.memory_space<vmem>>) attributes {dimension_semantics = [#tpu.dimension_semantics<parallel>], iteration_bounds = array<i64: 2>, scalar_prefetch = 0 : i64, scratch_operands = 0 : i64, tpu.core_type = #tpu.core_type<tc>, window_params = [{transform_indices = @transform_0, window_bounds = array<i64: 4, 4>}, {transform_indices = @transform_1, window_bounds = array<i64: 1, 4, 16, 16>}, {pipeline_mode = #tpu.pipeline_mode<synchronous>, transform_indices = @transform_2, window_bounds = array<i64: 2, 32, 16>}, {pipeline_mode = #tpu.pipeline_mode<synchronous>, transform_indices = @transform_3, window_bounds = array<i64: 16, 64>}, {transform_indices = @transform_4, window_bounds = array<i64: 1, 4, 32, 128>}]} {
    %c0 = arith.constant 0 : index
    %c0_0 = arith.constant 0 : index
    %c0_1 = arith.constant 0 : index
    %c0_2 = arith.constant 0 : index
    %0 = vector.load %arg2[%c0, %c0_0, %c0_1, %c0_2] : memref<1x4x16x16xf32, #tpu.memory_space<vmem>>, vector<1x4x16x16xf32>
    %1 = vector.shape_cast %0 : vector<1x4x16x16xf32> to vector<4x16x16xf32>
    %c0_3 = arith.constant 0 : index
    %c0_4 = arith.constant 0 : index
    %2 = memref.load %arg1[%c0_3, %c0_4] : memref<4x4xf32, #tpu.memory_space<smem>>
    %3 = vector.extract_strided_slice %1 {offsets = [0, 0, 0], sizes = [1, 16, 16], strides = [1, 1, 1]} : vector<4x16x16xf32> to vector<1x16x16xf32>
    %4 = vector.shape_cast %3 : vector<1x16x16xf32> to vector<16x16xf32>
    %5 = vector.broadcast %2 : f32 to vector<16x16xf32>
    %6 = arith.mulf %5, %4 : vector<16x16xf32>
    %c0_5 = arith.constant 0 : index
    %c1 = arith.constant 1 : index
    %7 = memref.load %arg1[%c0_5, %c1] : memref<4x4xf32, #tpu.memory_space<smem>>
    %8 = vector.extract_strided_slice %1 {offsets = [1, 0, 0], sizes = [1, 16, 16], strides = [1, 1, 1]} : vector<4x16x16xf32> to vector<1x16x16xf32>
    %9 = vector.shape_cast %8 : vector<1x16x16xf32> to vector<16x16xf32>
    %10 = vector.broadcast %7 : f32 to vector<16x16xf32>
    %11 = arith.mulf %10, %9 : vector<16x16xf32>
    %12 = arith.addf %6, %11 : vector<16x16xf32>
    %c0_6 = arith.constant 0 : index
    %c2 = arith.constant 2 : index
    %13 = memref.load %arg1[%c0_6, %c2] : memref<4x4xf32, #tpu.memory_space<smem>>
    %14 = vector.extract_strided_slice %1 {offsets = [2, 0, 0], sizes = [1, 16, 16], strides = [1, 1, 1]} : vector<4x16x16xf32> to vector<1x16x16xf32>
    %15 = vector.shape_cast %14 : vector<1x16x16xf32> to vector<16x16xf32>
    %16 = vector.broadcast %13 : f32 to vector<16x16xf32>
    %17 = arith.mulf %16, %15 : vector<16x16xf32>
    %18 = arith.addf %12, %17 : vector<16x16xf32>
    %c0_7 = arith.constant 0 : index
    %c3 = arith.constant 3 : index
    %19 = memref.load %arg1[%c0_7, %c3] : memref<4x4xf32, #tpu.memory_space<smem>>
    %20 = vector.extract_strided_slice %1 {offsets = [3, 0, 0], sizes = [1, 16, 16], strides = [1, 1, 1]} : vector<4x16x16xf32> to vector<1x16x16xf32>
    %21 = vector.shape_cast %20 : vector<1x16x16xf32> to vector<16x16xf32>
    %22 = vector.broadcast %19 : f32 to vector<16x16xf32>
    %23 = arith.mulf %22, %21 : vector<16x16xf32>
    %24 = arith.addf %18, %23 : vector<16x16xf32>
    %c1_8 = arith.constant 1 : index
    %c0_9 = arith.constant 0 : index
    %25 = memref.load %arg1[%c1_8, %c0_9] : memref<4x4xf32, #tpu.memory_space<smem>>
    %26 = vector.extract_strided_slice %1 {offsets = [0, 0, 0], sizes = [1, 16, 16], strides = [1, 1, 1]} : vector<4x16x16xf32> to vector<1x16x16xf32>
    %27 = vector.shape_cast %26 : vector<1x16x16xf32> to vector<16x16xf32>
    %28 = vector.broadcast %25 : f32 to vector<16x16xf32>
    %29 = arith.mulf %28, %27 : vector<16x16xf32>
    %c1_10 = arith.constant 1 : index
    %c1_11 = arith.constant 1 : index
    %30 = memref.load %arg1[%c1_10, %c1_11] : memref<4x4xf32, #tpu.memory_space<smem>>
    %31 = vector.extract_strided_slice %1 {offsets = [1, 0, 0], sizes = [1, 16, 16], strides = [1, 1, 1]} : vector<4x16x16xf32> to vector<1x16x16xf32>
    %32 = vector.shape_cast %31 : vector<1x16x16xf32> to vector<16x16xf32>
    %33 = vector.broadcast %30 : f32 to vector<16x16xf32>
    %34 = arith.mulf %33, %32 : vector<16x16xf32>
    %35 = arith.addf %29, %34 : vector<16x16xf32>
    %c1_12 = arith.constant 1 : index
    %c2_13 = arith.constant 2 : index
    %36 = memref.load %arg1[%c1_12, %c2_13] : memref<4x4xf32, #tpu.memory_space<smem>>
    %37 = vector.extract_strided_slice %1 {offsets = [2, 0, 0], sizes = [1, 16, 16], strides = [1, 1, 1]} : vector<4x16x16xf32> to vector<1x16x16xf32>
    %38 = vector.shape_cast %37 : vector<1x16x16xf32> to vector<16x16xf32>
    %39 = vector.broadcast %36 : f32 to vector<16x16xf32>
    %40 = arith.mulf %39, %38 : vector<16x16xf32>
    %41 = arith.addf %35, %40 : vector<16x16xf32>
    %c1_14 = arith.constant 1 : index
    %c3_15 = arith.constant 3 : index
    %42 = memref.load %arg1[%c1_14, %c3_15] : memref<4x4xf32, #tpu.memory_space<smem>>
    %43 = vector.extract_strided_slice %1 {offsets = [3, 0, 0], sizes = [1, 16, 16], strides = [1, 1, 1]} : vector<4x16x16xf32> to vector<1x16x16xf32>
    %44 = vector.shape_cast %43 : vector<1x16x16xf32> to vector<16x16xf32>
    %45 = vector.broadcast %42 : f32 to vector<16x16xf32>
    %46 = arith.mulf %45, %44 : vector<16x16xf32>
    %47 = arith.addf %41, %46 : vector<16x16xf32>
    %c2_16 = arith.constant 2 : index
    %c0_17 = arith.constant 0 : index
    %48 = memref.load %arg1[%c2_16, %c0_17] : memref<4x4xf32, #tpu.memory_space<smem>>
    %49 = vector.extract_strided_slice %1 {offsets = [0, 0, 0], sizes = [1, 16, 16], strides = [1, 1, 1]} : vector<4x16x16xf32> to vector<1x16x16xf32>
    %50 = vector.shape_cast %49 : vector<1x16x16xf32> to vector<16x16xf32>
    %51 = vector.broadcast %48 : f32 to vector<16x16xf32>
    %52 = arith.mulf %51, %50 : vector<16x16xf32>
    %c2_18 = arith.constant 2 : index
    %c1_19 = arith.constant 1 : index
    %53 = memref.load %arg1[%c2_18, %c1_19] : memref<4x4xf32, #tpu.memory_space<smem>>
    %54 = vector.extract_strided_slice %1 {offsets = [1, 0, 0], sizes = [1, 16, 16], strides = [1, 1, 1]} : vector<4x16x16xf32> to vector<1x16x16xf32>
    %55 = vector.shape_cast %54 : vector<1x16x16xf32> to vector<16x16xf32>
    %56 = vector.broadcast %53 : f32 to vector<16x16xf32>
    %57 = arith.mulf %56, %55 : vector<16x16xf32>
    %58 = arith.addf %52, %57 : vector<16x16xf32>
    %c2_20 = arith.constant 2 : index
    %c2_21 = arith.constant 2 : index
    %59 = memref.load %arg1[%c2_20, %c2_21] : memref<4x4xf32, #tpu.memory_space<smem>>
    %60 = vector.extract_strided_slice %1 {offsets = [2, 0, 0], sizes = [1, 16, 16], strides = [1, 1, 1]} : vector<4x16x16xf32> to vector<1x16x16xf32>
    %61 = vector.shape_cast %60 : vector<1x16x16xf32> to vector<16x16xf32>
    %62 = vector.broadcast %59 : f32 to vector<16x16xf32>
    %63 = arith.mulf %62, %61 : vector<16x16xf32>
    %64 = arith.addf %58, %63 : vector<16x16xf32>
    %c2_22 = arith.constant 2 : index
    %c3_23 = arith.constant 3 : index
    %65 = memref.load %arg1[%c2_22, %c3_23] : memref<4x4xf32, #tpu.memory_space<smem>>
    %66 = vector.extract_strided_slice %1 {offsets = [3, 0, 0], sizes = [1, 16, 16], strides = [1, 1, 1]} : vector<4x16x16xf32> to vector<1x16x16xf32>
    %67 = vector.shape_cast %66 : vector<1x16x16xf32> to vector<16x16xf32>
    %68 = vector.broadcast %65 : f32 to vector<16x16xf32>
    %69 = arith.mulf %68, %67 : vector<16x16xf32>
    %70 = arith.addf %64, %69 : vector<16x16xf32>
    %c3_24 = arith.constant 3 : index
    %c0_25 = arith.constant 0 : index
    %71 = memref.load %arg1[%c3_24, %c0_25] : memref<4x4xf32, #tpu.memory_space<smem>>
    %72 = vector.extract_strided_slice %1 {offsets = [0, 0, 0], sizes = [1, 16, 16], strides = [1, 1, 1]} : vector<4x16x16xf32> to vector<1x16x16xf32>
    %73 = vector.shape_cast %72 : vector<1x16x16xf32> to vector<16x16xf32>
    %74 = vector.broadcast %71 : f32 to vector<16x16xf32>
    %75 = arith.mulf %74, %73 : vector<16x16xf32>
    %c3_26 = arith.constant 3 : index
    %c1_27 = arith.constant 1 : index
    %76 = memref.load %arg1[%c3_26, %c1_27] : memref<4x4xf32, #tpu.memory_space<smem>>
    %77 = vector.extract_strided_slice %1 {offsets = [1, 0, 0], sizes = [1, 16, 16], strides = [1, 1, 1]} : vector<4x16x16xf32> to vector<1x16x16xf32>
    %78 = vector.shape_cast %77 : vector<1x16x16xf32> to vector<16x16xf32>
    %79 = vector.broadcast %76 : f32 to vector<16x16xf32>
    %80 = arith.mulf %79, %78 : vector<16x16xf32>
    %81 = arith.addf %75, %80 : vector<16x16xf32>
    %c3_28 = arith.constant 3 : index
    %c2_29 = arith.constant 2 : index
    %82 = memref.load %arg1[%c3_28, %c2_29] : memref<4x4xf32, #tpu.memory_space<smem>>
    %83 = vector.extract_strided_slice %1 {offsets = [2, 0, 0], sizes = [1, 16, 16], strides = [1, 1, 1]} : vector<4x16x16xf32> to vector<1x16x16xf32>
    %84 = vector.shape_cast %83 : vector<1x16x16xf32> to vector<16x16xf32>
    %85 = vector.broadcast %82 : f32 to vector<16x16xf32>
    %86 = arith.mulf %85, %84 : vector<16x16xf32>
    %87 = arith.addf %81, %86 : vector<16x16xf32>
    %c3_30 = arith.constant 3 : index
    %c3_31 = arith.constant 3 : index
    %88 = memref.load %arg1[%c3_30, %c3_31] : memref<4x4xf32, #tpu.memory_space<smem>>
    %89 = vector.extract_strided_slice %1 {offsets = [3, 0, 0], sizes = [1, 16, 16], strides = [1, 1, 1]} : vector<4x16x16xf32> to vector<1x16x16xf32>
    %90 = vector.shape_cast %89 : vector<1x16x16xf32> to vector<16x16xf32>
    %91 = vector.broadcast %88 : f32 to vector<16x16xf32>
    %92 = arith.mulf %91, %90 : vector<16x16xf32>
    %93 = arith.addf %87, %92 : vector<16x16xf32>
    %94 = tpu.concatenate %24, %47, %70, %93 in 0 : vector<16x16xf32>, vector<16x16xf32>, vector<16x16xf32>, vector<16x16xf32> -> vector<64x16xf32>
    %c0_32 = arith.constant 0 : index
    %c0_33 = arith.constant 0 : index
    %95 = vector.load %arg4[%c0_32, %c0_33] : memref<16x64xf32, #tpu.memory_space<vmem>>, vector<16x64xf32>
    %cst = arith.constant dense<0.000000e+00> : vector<64x64xf32>
    %96 = tpu.matmul %94, %95, %cst {dimension_numbers = #tpu.dot_dimension_numbers<[1], [0], [0], [1], [0, 0, 1, 1], [], []>} : vector<64x16xf32>, vector<16x64xf32>, vector<64x64xf32> -> vector<64x64xf32>
    %97 = vector.extract_strided_slice %96 {offsets = [0, 0], sizes = [16, 64], strides = [1, 1]} : vector<64x64xf32> to vector<16x64xf32>
    %c0_34 = arith.constant 0 : index
    %c0_35 = arith.constant 0 : index
    %c0_36 = arith.constant 0 : index
    %98 = vector.load %arg3[%c0_34, %c0_35, %c0_36] : memref<2x32x16xf32, #tpu.memory_space<vmem>>, vector<1x32x16xf32>
    %99 = vector.shape_cast %98 : vector<1x32x16xf32> to vector<32x16xf32>
    %cst_37 = arith.constant dense<0.000000e+00> : vector<32x64xf32>
    %100 = tpu.matmul %99, %97, %cst_37 {dimension_numbers = #tpu.dot_dimension_numbers<[1], [0], [0], [1], [0, 0, 1, 1], [], []>} : vector<32x16xf32>, vector<16x64xf32>, vector<32x64xf32> -> vector<32x64xf32>
    %c1_38 = arith.constant 1 : index
    %c0_39 = arith.constant 0 : index
    %c0_40 = arith.constant 0 : index
    %101 = vector.load %arg3[%c1_38, %c0_39, %c0_40] : memref<2x32x16xf32, #tpu.memory_space<vmem>>, vector<1x32x16xf32>
    %102 = vector.shape_cast %101 : vector<1x32x16xf32> to vector<32x16xf32>
    %cst_41 = arith.constant dense<0.000000e+00> : vector<32x64xf32>
    %103 = tpu.matmul %102, %97, %cst_41 {dimension_numbers = #tpu.dot_dimension_numbers<[1], [0], [0], [1], [0, 0, 1, 1], [], []>} : vector<32x16xf32>, vector<16x64xf32>, vector<32x64xf32> -> vector<32x64xf32>
    %104 = tpu.concatenate %100, %103 in 1 : vector<32x64xf32>, vector<32x64xf32> -> vector<32x128xf32>
    %c0_42 = arith.constant 0 : index
    %c0_43 = arith.constant 0 : index
    %c0_44 = arith.constant 0 : index
    %c0_45 = arith.constant 0 : index
    %105 = vector.load %arg5[%c0_42, %c0_43, %c0_44, %c0_45] : memref<1x4x32x128xf32, #tpu.memory_space<vmem>>, vector<1x1x32x128xf32>
    %106 = vector.shape_cast %105 : vector<1x1x32x128xf32> to vector<32x128xf32>
    %107 = vector.shape_cast %104 : vector<32x128xf32> to vector<1x1x32x128xf32>
    tpu.vector_store %arg5[%c0_42, %c0_43, %c0_44, %c0_45], %107 {strides = array<i32>} : memref<1x4x32x128xf32, #tpu.memory_space<vmem>>, vector<1x1x32x128xf32>,
    %108 = vector.extract_strided_slice %96 {offsets = [16, 0], sizes = [16, 64], strides = [1, 1]} : vector<64x64xf32> to vector<16x64xf32>
    %c0_46 = arith.constant 0 : index
    %c0_47 = arith.constant 0 : index
    %c0_48 = arith.constant 0 : index
    %109 = vector.load %arg3[%c0_46, %c0_47, %c0_48] : memref<2x32x16xf32, #tpu.memory_space<vmem>>, vector<1x32x16xf32>
    %110 = vector.shape_cast %109 : vector<1x32x16xf32> to vector<32x16xf32>
    %cst_49 = arith.constant dense<0.000000e+00> : vector<32x64xf32>
    %111 = tpu.matmul %110, %108, %cst_49 {dimension_numbers = #tpu.dot_dimension_numbers<[1], [0], [0], [1], [0, 0, 1, 1], [], []>} : vector<32x16xf32>, vector<16x64xf32>, vector<32x64xf32> -> vector<32x64xf32>
    %c1_50 = arith.constant 1 : index
    %c0_51 = arith.constant 0 : index
    %c0_52 = arith.constant 0 : index
    %112 = vector.load %arg3[%c1_50, %c0_51, %c0_52] : memref<2x32x16xf32, #tpu.memory_space<vmem>>, vector<1x32x16xf32>
    %113 = vector.shape_cast %112 : vector<1x32x16xf32> to vector<32x16xf32>
    %cst_53 = arith.constant dense<0.000000e+00> : vector<32x64xf32>
    %114 = tpu.matmul %113, %108, %cst_53 {dimension_numbers = #tpu.dot_dimension_numbers<[1], [0], [0], [1], [0, 0, 1, 1], [], []>} : vector<32x16xf32>, vector<16x64xf32>, vector<32x64xf32> -> vector<32x64xf32>
    %115 = tpu.concatenate %111, %114 in 1 : vector<32x64xf32>, vector<32x64xf32> -> vector<32x128xf32>
    %c0_54 = arith.constant 0 : index
    %c1_55 = arith.constant 1 : index
    %c0_56 = arith.constant 0 : index
    %c0_57 = arith.constant 0 : index
    %116 = vector.load %arg5[%c0_54, %c1_55, %c0_56, %c0_57] : memref<1x4x32x128xf32, #tpu.memory_space<vmem>>, vector<1x1x32x128xf32>
    %117 = vector.shape_cast %116 : vector<1x1x32x128xf32> to vector<32x128xf32>
    %118 = vector.shape_cast %115 : vector<32x128xf32> to vector<1x1x32x128xf32>
    tpu.vector_store %arg5[%c0_54, %c1_55, %c0_56, %c0_57], %118 {strides = array<i32>} : memref<1x4x32x128xf32, #tpu.memory_space<vmem>>, vector<1x1x32x128xf32>,
    %119 = vector.extract_strided_slice %96 {offsets = [32, 0], sizes = [16, 64], strides = [1, 1]} : vector<64x64xf32> to vector<16x64xf32>
    %c0_58 = arith.constant 0 : index
    %c0_59 = arith.constant 0 : index
    %c0_60 = arith.constant 0 : index
    %120 = vector.load %arg3[%c0_58, %c0_59, %c0_60] : memref<2x32x16xf32, #tpu.memory_space<vmem>>, vector<1x32x16xf32>
    %121 = vector.shape_cast %120 : vector<1x32x16xf32> to vector<32x16xf32>
    %cst_61 = arith.constant dense<0.000000e+00> : vector<32x64xf32>
    %122 = tpu.matmul %121, %119, %cst_61 {dimension_numbers = #tpu.dot_dimension_numbers<[1], [0], [0], [1], [0, 0, 1, 1], [], []>} : vector<32x16xf32>, vector<16x64xf32>, vector<32x64xf32> -> vector<32x64xf32>
    %c1_62 = arith.constant 1 : index
    %c0_63 = arith.constant 0 : index
    %c0_64 = arith.constant 0 : index
    %123 = vector.load %arg3[%c1_62, %c0_63, %c0_64] : memref<2x32x16xf32, #tpu.memory_space<vmem>>, vector<1x32x16xf32>
    %124 = vector.shape_cast %123 : vector<1x32x16xf32> to vector<32x16xf32>
    %cst_65 = arith.constant dense<0.000000e+00> : vector<32x64xf32>
    %125 = tpu.matmul %124, %119, %cst_65 {dimension_numbers = #tpu.dot_dimension_numbers<[1], [0], [0], [1], [0, 0, 1, 1], [], []>} : vector<32x16xf32>, vector<16x64xf32>, vector<32x64xf32> -> vector<32x64xf32>
    %126 = tpu.concatenate %122, %125 in 1 : vector<32x64xf32>, vector<32x64xf32> -> vector<32x128xf32>
    %c0_66 = arith.constant 0 : index
    %c2_67 = arith.constant 2 : index
    %c0_68 = arith.constant 0 : index
    %c0_69 = arith.constant 0 : index
    %127 = vector.load %arg5[%c0_66, %c2_67, %c0_68, %c0_69] : memref<1x4x32x128xf32, #tpu.memory_space<vmem>>, vector<1x1x32x128xf32>
    %128 = vector.shape_cast %127 : vector<1x1x32x128xf32> to vector<32x128xf32>
    %129 = vector.shape_cast %126 : vector<32x128xf32> to vector<1x1x32x128xf32>
    tpu.vector_store %arg5[%c0_66, %c2_67, %c0_68, %c0_69], %129 {strides = array<i32>} : memref<1x4x32x128xf32, #tpu.memory_space<vmem>>, vector<1x1x32x128xf32>,
    %130 = vector.extract_strided_slice %96 {offsets = [48, 0], sizes = [16, 64], strides = [1, 1]} : vector<64x64xf32> to vector<16x64xf32>
    %c0_70 = arith.constant 0 : index
    %c0_71 = arith.constant 0 : index
    %c0_72 = arith.constant 0 : index
    %131 = vector.load %arg3[%c0_70, %c0_71, %c0_72] : memref<2x32x16xf32, #tpu.memory_space<vmem>>, vector<1x32x16xf32>
    %132 = vector.shape_cast %131 : vector<1x32x16xf32> to vector<32x16xf32>
    %cst_73 = arith.constant dense<0.000000e+00> : vector<32x64xf32>
    %133 = tpu.matmul %132, %130, %cst_73 {dimension_numbers = #tpu.dot_dimension_numbers<[1], [0], [0], [1], [0, 0, 1, 1], [], []>} : vector<32x16xf32>, vector<16x64xf32>, vector<32x64xf32> -> vector<32x64xf32>
    %c1_74 = arith.constant 1 : index
    %c0_75 = arith.constant 0 : index
    %c0_76 = arith.constant 0 : index
    %134 = vector.load %arg3[%c1_74, %c0_75, %c0_76] : memref<2x32x16xf32, #tpu.memory_space<vmem>>, vector<1x32x16xf32>
    %135 = vector.shape_cast %134 : vector<1x32x16xf32> to vector<32x16xf32>
    %cst_77 = arith.constant dense<0.000000e+00> : vector<32x64xf32>
    %136 = tpu.matmul %135, %130, %cst_77 {dimension_numbers = #tpu.dot_dimension_numbers<[1], [0], [0], [1], [0, 0, 1, 1], [], []>} : vector<32x16xf32>, vector<16x64xf32>, vector<32x64xf32> -> vector<32x64xf32>
    %137 = tpu.concatenate %133, %136 in 1 : vector<32x64xf32>, vector<32x64xf32> -> vector<32x128xf32>
    %c0_78 = arith.constant 0 : index
    %c3_79 = arith.constant 3 : index
    %c0_80 = arith.constant 0 : index
    %c0_81 = arith.constant 0 : index
    %138 = vector.load %arg5[%c0_78, %c3_79, %c0_80, %c0_81] : memref<1x4x32x128xf32, #tpu.memory_space<vmem>>, vector<1x1x32x128xf32>
    %139 = vector.shape_cast %138 : vector<1x1x32x128xf32> to vector<32x128xf32>
    %140 = vector.shape_cast %137 : vector<32x128xf32> to vector<1x1x32x128xf32>
    tpu.vector_store %arg5[%c0_78, %c3_79, %c0_80, %c0_81], %140 {strides = array<i32>} : memref<1x4x32x128xf32, #tpu.memory_space<vmem>>, vector<1x1x32x128xf32>,
    return
  }
  func.func @transform_0(%arg0: i32) -> (i32, i32) {
    %c0_i32 = arith.constant 0 : i32
    %c0_i32_0 = arith.constant 0 : i32
    %c0_i32_1 = arith.constant 0 : i32
    return %c0_i32, %c0_i32_0 : i32, i32
  }
  func.func @transform_1(%arg0: i32) -> (i32, i32, i32, i32) {
    %c0_i32 = arith.constant 0 : i32
    %c0_i32_0 = arith.constant 0 : i32
    %c0_i32_1 = arith.constant 0 : i32
    %c0_i32_2 = arith.constant 0 : i32
    return %arg0, %c0_i32, %c0_i32_0, %c0_i32_1 : i32, i32, i32, i32
  }
  func.func @transform_2(%arg0: i32) -> (i32, i32, i32) {
    %c0_i32 = arith.constant 0 : i32
    %c0_i32_0 = arith.constant 0 : i32
    %c0_i32_1 = arith.constant 0 : i32
    %c0_i32_2 = arith.constant 0 : i32
    return %c0_i32, %c0_i32_0, %c0_i32_1 : i32, i32, i32
  }
  func.func @transform_3(%arg0: i32) -> (i32, i32) {
    %c0_i32 = arith.constant 0 : i32
    %c0_i32_0 = arith.constant 0 : i32
    %c0_i32_1 = arith.constant 0 : i32
    return %c0_i32, %c0_i32_0 : i32, i32
  }
  func.func @transform_4(%arg0: i32) -> (i32, i32, i32, i32) {
    %c0_i32 = arith.constant 0 : i32
    %c0_i32_0 = arith.constant 0 : i32
    %c0_i32_1 = arith.constant 0 : i32
    %c0_i32_2 = arith.constant 0 : i32
    return %arg0, %c0_i32, %c0_i32_0, %c0_i32_1 : i32, i32, i32, i32
  }
}

</mosaic_0001>

<llo_original>
// kernel: tpu_custom_call.1
$region0: #{tpu_custom_call.1}
  #allocation0 [shape = 'u32[]', space=smem, size = 0x4, offset = 0x4, fixed_abs, tag = 'smem constant byte address 0x4 - core index']
  #allocation1 [shape = 'u32[72,128]{1,0:T(1,128)}', space=vmem, size = 0x9000, scoped, tag = 'internal scratch']
  %s0 = inlined_call_operand.vmem [shape: f32[4,4], index: 0, kind: input, shape index: {}]
  %s1 = inlined_call_operand.hbm [shape: f32[2,4,16,16], index: 1, kind: input, shape index: {}]
  %s2 = inlined_call_operand.vmem [shape: f32[2,32,16], index: 2, kind: input, shape index: {}]
  %s3 = inlined_call_operand.vmem [shape: f32[16,64], index: 3, kind: input, shape index: {}]
  %s4 = inlined_call_operand.hbm [shape: f32[2,4,32,128], index: 4, kind: output, shape index: {}]
  %s5 = sld [smem:[#allocation0]]
  $region57: #{tpu_custom_call.1} parent=0
    _
  %s7 = ssub.s32 1, %s5
  %s8 = scalar_select 0, %s7, %s5
  $region1: #{tpu_custom_call.1} parent=0
    #allocation2 [shape = 'u8[2048]{0}', space=smem, size = 0x800, scoped, tag = 'input window, operand 0, single buffered']
    #allocation3 [shape = 's32[2]{0}', space=sflag, size = 0x8, scoped, tag = 'scoped memory for tpu_custom_call.1']
    #allocation4 [shape = 's32[2]{0}', space=sflag, size = 0x8, scoped, tag = 'scoped memory for tpu_custom_call.1']
    #allocation5 [shape = 's32[2]{0}', space=sflag, size = 0x8, scoped, tag = 'scoped memory for tpu_custom_call.1']
    #allocation6 [shape = 'u8[65536]{0}', space=vmem, size = 0x10000, scoped, tag = 'input window, operand 1']
    #allocation7 [shape = 'u8[131072]{0}', space=vmem, size = 0x20000, scoped, tag = 'output window, operand 0']
    %9 = vsyncpa [#allocation5], 0
    %10 = vsyncpa [#allocation3], 0
    %s11 = scalar_lea.sflag [#allocation3], 1
    %12 = vsyncpa %s11, 0
    %13 = vsyncpa [#allocation4], 0
    %s14 = scalar_lea.sflag [#allocation4], 1
    %15 = vsyncpa %s14, 0
    loop: start=0, step=1, limit=4
    $region2: #{tpu_custom_call.1} parent=1 // loop_pre_header
      _
    $region3: #{tpu_custom_call.1} parent=1 // loop_header
      %s17 = sphi 0, %s21
      %p18 = scmp.ge.s32.totalorder %s17, 4
      %s25 = sphi 0, %s25
      %s27 = sphi 0, %s25
      %s28 = sphi 0, %s27
      %s42 = sphi 0, %s28
      %s48 = sphi 0, %s50
      %s51 = sphi 0, %s48
      %s52 = sphi 0, %s51
      %s68 = sphi 0, %s52
      %s72 = sphi 0, %s72
      %s74 = sphi 0, %s72
      %s75 = sphi 0, %s74
      %s89 = sphi 0, %s75
      %s93 = sphi 0, %s93
      %s95 = sphi 0, %s93
      %s96 = sphi 0, %s95
      %s110 = sphi 0, %s96
      %s116 = sphi 0, %s118
      %s119 = sphi 0, %s116
      %s120 = sphi 0, %s119
      %s136 = sphi 0, %s120
    $region4: #{tpu_custom_call.1} parent=1 // loop_header_branch
      %20 = sbr.rel (%p18) target = $region8
    $region5: #{tpu_custom_call.1} parent=1 // loop_body
      %s22 = ssub.s32 %s17, 1
      %s23 = ssub.s32 %s17, 2
      %s24 = sadd.s32 %s17, 1
      %s26 = sadd.s32 %s25, 1
      %p29 = scmp.eq.s32.totalorder %s17, 1
      %p30 = scmp.ne.s32.totalorder %s25, %s27
      %p31 = scmp.eq.s32.totalorder %s17, 0
      %p32 = por %p30, %p31
      %p33 = scmp.ne.s32.totalorder %s25, %s27
      %p34 = scmp.eq.s32.totalorder %s22, 1
      %p35 = por %p33, %p34
      %p36 = scmp.ne.s32.totalorder %s27, %s28
      %p37 = scmp.eq.s32.totalorder %s22, 0
      %p38 = por %p36, %p37
      %p39 = scmp.ne.s32.totalorder %s27, %s28
      %p40 = scmp.eq.s32.totalorder %s23, 1
      %p41 = por %p39, %p40
      %p43 = scmp.ne.s32.totalorder %s28, %s42
      %p44 = scmp.eq.s32.totalorder %s23, 0
      %p45 = por %p43, %p44
      %s46 = ssub.s32 %s17, %s24
      %p47 = scmp.eq.s32.totalorder %s46, 0
      %s49 = sadd.s32 %s48, 1
      %s50 = scalar_select %p47, %s48, %s49
      %p53 = pneg %p47
      %p54 = scmp.eq.s32.totalorder %s17, 1
      %p55 = por %p53, %p54
      %p56 = scmp.ne.s32.totalorder %s48, %s51
      %p57 = scmp.eq.s32.totalorder %s17, 0
      %p58 = por %p56, %p57
      %p59 = scmp.ne.s32.totalorder %s48, %s51
      %p60 = scmp.eq.s32.totalorder %s22, 1
      %p61 = por %p59, %p60
      %p62 = scmp.ne.s32.totalorder %s51, %s52
      %p63 = scmp.eq.s32.totalorder %s22, 0
      %p64 = por %p62, %p63
      %p65 = scmp.ne.s32.totalorder %s51, %s52
      %p66 = scmp.eq.s32.totalorder %s23, 1
      %p67 = por %p65, %p66
      %p69 = scmp.ne.s32.totalorder %s52, %s68
      %p70 = scmp.eq.s32.totalorder %s23, 0
      %p71 = por %p69, %p70
      %s73 = sadd.s32 %s72, 1
      %p76 = scmp.eq.s32.totalorder %s17, 1
      %p77 = scmp.ne.s32.totalorder %s72, %s74
      %p78 = scmp.eq.s32.totalorder %s17, 0
      %p79 = por %p77, %p78
      %p80 = scmp.ne.s32.totalorder %s72, %s74
      %p81 = scmp.eq.s32.totalorder %s22, 1
      %p82 = por %p80, %p81
      %p83 = scmp.ne.s32.totalorder %s74, %s75
      %p84 = scmp.eq.s32.totalorder %s22, 0
      %p85 = por %p83, %p84
      %p86 = scmp.ne.s32.totalorder %s74, %s75
      %p87 = scmp.eq.s32.totalorder %s23, 1
      %p88 = por %p86, %p87
      %p90 = scmp.ne.s32.totalorder %s75, %s89
      %p91 = scmp.eq.s32.totalorder %s23, 0
      %p92 = por %p90, %p91
      %s94 = sadd.s32 %s93, 1
      %p97 = scmp.eq.s32.totalorder %s17, 1
      %p98 = scmp.ne.s32.totalorder %s93, %s95
      %p99 = scmp.eq.s32.totalorder %s17, 0
      %p100 = por %p98, %p99
      %p101 = scmp.ne.s32.totalorder %s93, %s95
      %p102 = scmp.eq.s32.totalorder %s22, 1
      %p103 = por %p101, %p102
      %p104 = scmp.ne.s32.totalorder %s95, %s96
      %p105 = scmp.eq.s32.totalorder %s22, 0
      %p106 = por %p104, %p105
      %p107 = scmp.ne.s32.totalorder %s95, %s96
      %p108 = scmp.eq.s32.totalorder %s23, 1
      %p109 = por %p107, %p108
      %p111 = scmp.ne.s32.totalorder %s96, %s110
      %p112 = scmp.eq.s32.totalorder %s23, 0
      %p113 = por %p111, %p112
      %s114 = ssub.s32 %s17, %s24
      %p115 = scmp.eq.s32.totalorder %s114, 0
      %s117 = sadd.s32 %s116, 1
      %s118 = scalar_select %p115, %s116, %s117
      %p121 = pneg %p115
      %p122 = scmp.eq.s32.totalorder %s17, 1
      %p123 = por %p121, %p122
      %p124 = scmp.ne.s32.totalorder %s116, %s119
      %p125 = scmp.eq.s32.totalorder %s17, 0
      %p126 = por %p124, %p125
      %p127 = scmp.ne.s32.totalorder %s116, %s119
      %p128 = scmp.eq.s32.totalorder %s22, 1
      %p129 = por %p127, %p128
      %p130 = scmp.ne.s32.totalorder %s119, %s120
      %p131 = scmp.eq.s32.totalorder %s22, 0
      %p132 = por %p130, %p131
      %p133 = scmp.ne.s32.totalorder %s119, %s120
      %p134 = scmp.eq.s32.totalorder %s23, 1
      %p135 = por %p133, %p134
      %p137 = scmp.ne.s32.totalorder %s120, %s136
      %p138 = scmp.eq.s32.totalorder %s23, 0
      %p139 = por %p137, %p138
      %p140 = scmp.le.s32.totalorder 1, %s17
      %p141 = scmp.lt.s32.totalorder %s17, 3
      %p142 = pnand %p140, %p141
      %p143 = pneg %p142
      // Predicated region
      $region9: #{tpu_custom_call.1} parent=5 // pred_check
        _
      $region10: #{tpu_custom_call.1} parent=5 // pred_check_branch
        %145 = sbr.rel (%p142) target = $region12
      $region11: #{tpu_custom_call.1} parent=5 // pred_region
        %s146 = ssub.s32 %s17, 1
        // Predicated region
        $region13: #{tpu_custom_call.1} parent=11 // pred_check
          %p147 = pneg %p38
        $region14: #{tpu_custom_call.1} parent=11 // pred_check_branch
          %149 = sbr.rel (%p147) target = $region16
        $region15: #{tpu_custom_call.1} parent=11 // pred_region
          %151 = vsyncadd [#allocation5], 0
          %s153 = sshll.u32 %s0, 4
          %s154 = int_to_ptr.vmem [resolvable:$true] %s153
          %156 = dma.vmem_to_smem %s154, 64, [#allocation2], [#allocation5]
        $region16: #{tpu_custom_call.1} parent=11 // pred_fallthru
          _
        // Predicated region
        $region17: #{tpu_custom_call.1} parent=11 // pred_check
          %p157 = pneg %p85
        $region18: #{tpu_custom_call.1} parent=11 // pred_check_branch
          %159 = sbr.rel (%p157) target = $region20
        $region19: #{tpu_custom_call.1} parent=11 // pred_region
          _
        $region20: #{tpu_custom_call.1} parent=11 // pred_fallthru
          _
        // Predicated region
        $region21: #{tpu_custom_call.1} parent=11 // pred_check
          %p160 = pneg %p106
        $region22: #{tpu_custom_call.1} parent=11 // pred_check_branch
          %162 = sbr.rel (%p160) target = $region24
        $region23: #{tpu_custom_call.1} parent=11 // pred_region
          _
        $region24: #{tpu_custom_call.1} parent=11 // pred_fallthru
          _
      $region12: #{tpu_custom_call.1} parent=5 // pred_fallthru
        _
      %p163 = scmp.lt.s32.totalorder %s17, 2
      // Predicated region
      $region25: #{tpu_custom_call.1} parent=5 // pred_check
        %p164 = pneg %p163
      $region26: #{tpu_custom_call.1} parent=5 // pred_check_branch
        %166 = sbr.rel (%p164) target = $region28
      $region27: #{tpu_custom_call.1} parent=5 // pred_region
        // Predicated region
        $region29: #{tpu_custom_call.1} parent=27 // pred_check
          %p167 = pneg %p58
        $region30: #{tpu_custom_call.1} parent=27 // pred_check_branch
          %169 = sbr.rel (%p167) target = $region32
        $region31: #{tpu_custom_call.1} parent=27 // pred_region
          %s170 = sand.u32 %s48, 1
          %s171 = scalar_lea.sflag [#allocation3], %s170
          %s172 = sand.u32 %s48, 1
          %s173 = smul.addr %s172, 64
          %s174 = scalar_lea.vmem [#allocation6], %s173
          %176 = vsyncadd %s171, 0
          %s177 = smul.addr %s17, 8
          %s178 = smul.addr %s177, 8
          %s179 = scalar_lea.hbm %s1, %s178
          %s180 = sshll.u32 %s179, 4
          %s181 = int_to_ptr.hbm [resolvable:$true] %s180
          %s182 = sshll.u32 %s174, 4
          %s183 = int_to_ptr.vmem [resolvable:$true] %s182
          %188 = dma.hbm_to_vmem [thread:$0]  %s181, 1024, %s183, %s171, 128, 128, 8
        $region32: #{tpu_custom_call.1} parent=27 // pred_fallthru
          _
      $region28: #{tpu_custom_call.1} parent=5 // pred_fallthru
        _
      %p189 = scmp.le.s32.totalorder 1, %s17
      %p190 = scmp.lt.s32.totalorder %s17, 3
      %p191 = pnand %p189, %p190
      %p192 = pneg %p191
      // Predicated region
      $region33: #{tpu_custom_call.1} parent=5 // pred_check
        _
      $region34: #{tpu_custom_call.1} parent=5 // pred_check_branch
        %194 = sbr.rel (%p191) target = $region36
      $region35: #{tpu_custom_call.1} parent=5 // pred_region
        %s195 = ssub.s32 %s17, 1
        // Predicated region
        $region37: #{tpu_custom_call.1} parent=35 // pred_check
          %p196 = pneg %p38
        $region38: #{tpu_custom_call.1} parent=35 // pred_check_branch
          %198 = sbr.rel (%p196) target = $region40
        $region39: #{tpu_custom_call.1} parent=35 // pred_region
          %200 = dma.done [#allocation5], 64
        $region40: #{tpu_custom_call.1} parent=35 // pred_fallthru
          _
        %s201 = sand.u32 %s51, 1
        %s202 = scalar_lea.sflag [#allocation3], %s201
        %s203 = sand.u32 %s51, 1
        %s204 = smul.addr %s203, 64
        %s205 = scalar_lea.vmem [#allocation6], %s204
        // Predicated region
        $region41: #{tpu_custom_call.1} parent=35 // pred_check
          %p206 = pneg %p64
        $region42: #{tpu_custom_call.1} parent=35 // pred_check_branch
          %208 = sbr.rel (%p206) target = $region44
        $region43: #{tpu_custom_call.1} parent=35 // pred_region
          %210 = dma.done %s202, 1024
        $region44: #{tpu_custom_call.1} parent=35 // pred_fallthru
          _
        %211 = sfence
        %p212 = pneg %p38
        %p213 = pneg %p35
        %s214 = sand.u32 %s51, 1
        %s215 = scalar_lea.sflag [#allocation3], %s214
        %s216 = sand.u32 %s51, 1
        %s217 = smul.addr %s216, 64
        %s218 = scalar_lea.vmem [#allocation6], %s217
        %p219 = pneg %p64
        %p220 = pneg %p61
        %p221 = pneg %p85
        %p222 = pneg %p82
        %p223 = pneg %p106
        %p224 = pneg %p103
        %p225 = pneg %p132
        %p226 = pneg %p129
        %s227 = sand.u32 %s119, 1
        %s228 = scalar_lea.sflag [#allocation4], %s227
        %s229 = sand.u32 %s119, 1
        %s230 = smul.addr %s229, 128
        %s231 = scalar_lea.vmem [#allocation7], %s230
        %v232 = vld [vmem:[%s205] sm:$0xff]
        %v233 = vld [vmem:[%s205 + $0x8] sm:$0xff]
        %v234 = vld [vmem:[%s205 + $0x10] sm:$0xff]
        %v235 = vld [vmem:[%s205 + $0x18] sm:$0xff]
        %v236 = vld [vmem:[%s205 + $0x20] sm:$0xff]
        %v237 = vld [vmem:[%s205 + $0x28] sm:$0xff]
        %v238 = vld [vmem:[%s205 + $0x30] sm:$0xff]
        %v239 = vld [vmem:[%s205 + $0x38] sm:$0xff]
        %s240 = sld [smem:[#allocation2]]
        %v241 = vstv %s240
        %v242 = vmul.f32 %v241, %v232
        %v243 = vmul.f32 %v241, %v233
        %s244 = sld [smem:[#allocation2 + $0x1]]
        %v245 = vstv %s244
        %v246 = vmul.f32 %v245, %v234
        %v247 = vmul.f32 %v245, %v235
        %v248 = vadd.f32 %v242, %v246
        %v249 = vadd.f32 %v243, %v247
        %s250 = sld [smem:[#allocation2 + $0x2]]
        %v251 = vstv %s250
        %v252 = vmul.f32 %v251, %v236
        %v253 = vmul.f32 %v251, %v237
        %v254 = vadd.f32 %v248, %v252
        %v255 = vadd.f32 %v249, %v253
        %s256 = sld [smem:[#allocation2 + $0x3]]
        %v257 = vstv %s256
        %v258 = vmul.f32 %v257, %v238
        %v259 = vmul.f32 %v257, %v239
        %v260 = vadd.f32 %v254, %v258
        %v261 = vadd.f32 %v255, %v259
        %s262 = sld [smem:[#allocation2 + $0x80]]
        %v263 = vstv %s262
        %v264 = vmul.f32 %v263, %v232
        %v265 = vmul.f32 %v263, %v233
        %s266 = sld [smem:[#allocation2 + $0x81]]
        %v267 = vstv %s266
        %v268 = vmul.f32 %v267, %v234
        %v269 = vmul.f32 %v267, %v235
        %v270 = vadd.f32 %v264, %v268
        %v271 = vadd.f32 %v265, %v269
        %s272 = sld [smem:[#allocation2 + $0x82]]
        %v273 = vstv %s272
        %v274 = vmul.f32 %v273, %v236
        %v275 = vmul.f32 %v273, %v237
        %v276 = vadd.f32 %v270, %v274
        %v277 = vadd.f32 %v271, %v275
        %s278 = sld [smem:[#allocation2 + $0x83]]
        %v279 = vstv %s278
        %v280 = vmul.f32 %v279, %v238
        %v281 = vmul.f32 %v279, %v239
        %v282 = vadd.f32 %v276, %v280
        %v283 = vadd.f32 %v277, %v281
        %s284 = sld [smem:[#allocation2 + $0x100]]
        %v285 = vstv %s284
        %v286 = vmul.f32 %v285, %v232
        %v287 = vmul.f32 %v285, %v233
        %s288 = sld [smem:[#allocation2 + $0x101]]
        %v289 = vstv %s288
        %v290 = vmul.f32 %v289, %v234
        %v291 = vmul.f32 %v289, %v235
        %v292 = vadd.f32 %v286, %v290
        %v293 = vadd.f32 %v287, %v291
        %s294 = sld [smem:[#allocation2 + $0x102]]
        %v295 = vstv %s294
        %v296 = vmul.f32 %v295, %v236
        %v297 = vmul.f32 %v295, %v237
        %v298 = vadd.f32 %v292, %v296
        %v299 = vadd.f32 %v293, %v297
        %s300 = sld [smem:[#allocation2 + $0x103]]
        %v301 = vstv %s300
        %v302 = vmul.f32 %v301, %v238
        %v303 = vmul.f32 %v301, %v239
        %v304 = vadd.f32 %v298, %v302
        %v305 = vadd.f32 %v299, %v303
        %s306 = sld [smem:[#allocation2 + $0x180]]
        %v307 = vstv %s306
        %v308 = vmul.f32 %v307, %v232
        %v309 = vmul.f32 %v307, %v233
        %s310 = sld [smem:[#allocation2 + $0x181]]
        %v311 = vstv %s310
        %v312 = vmul.f32 %v311, %v234
        %v313 = vmul.f32 %v311, %v235
        %v314 = vadd.f32 %v308, %v312
        %v315 = vadd.f32 %v309, %v313
        %s316 = sld [smem:[#allocation2 + $0x182]]
        %v317 = vstv %s316
        %v318 = vmul.f32 %v317, %v236
        %v319 = vmul.f32 %v317, %v237
        %v320 = vadd.f32 %v314, %v318
        %v321 = vadd.f32 %v315, %v319
        %s322 = sld [smem:[#allocation2 + $0x183]]
        %v323 = vstv %s322
        %v324 = vmul.f32 %v323, %v238
        %v325 = vmul.f32 %v323, %v239
        %v326 = vadd.f32 %v320, %v324
        %v327 = vadd.f32 %v321, %v325
        %v328 = vld [vmem:[%s3] sm:$0xff]
        %v329 = vld [vmem:[%s3 + $0x8] sm:$0xff]
        %vm330 = vcmask 130048
        %v332 = vsel %vm330, %v260, 0
        %v335 = vsel %vm330, %v261, 0
        %v338 = vsel %vm330, %v282, 0
        %v341 = vsel %vm330, %v283, 0
        %v344 = vsel %vm330, %v304, 0
        %v347 = vsel %vm330, %v305, 0
        %v350 = vsel %vm330, %v326, 0
        %v353 = vsel %vm330, %v327, 0
        %355 = vmatpush.msra.mxu0 0.0
        %356 = vmatpush.msra.mxu0 0.0
        %357 = vmatpush.msra.mxu0 0.0
        %358 = vmatpush.msra.mxu0 0.0
        %359 = vmatpush.msra.mxu0 0.0
        %360 = vmatpush.msra.mxu0 0.0
        %361 = vmatpush.msra.mxu0 0.0
        %362 = vmatpush.msra.mxu0 0.0
        %363 = vmatpush.msra.mxu0 0.0
        %364 = vmatpush.msra.mxu0 0.0
        %365 = vmatpush.msra.mxu0 0.0
        %366 = vmatpush.msra.mxu0 0.0
        %367 = vmatpush.msra.mxu0 0.0
        %368 = vmatpush.msra.mxu0 0.0
        %369 = vmatpush.msra.mxu0 %v329
        %370 = vmatpush.msra.mxu0 %v328
        %371 = vmatmul.f32.gmra.mxu0 %v332
        %v372 = vpop.f32.mrf.mxu0
        %v373 = vadd.f32 0.0, %v372
        %374 = vmatmul.f32.gmra.mxu0 %v335
        %v375 = vpop.f32.mrf.mxu0
        %v376 = vadd.f32 0.0, %v375
        %377 = vmatmul.f32.gmra.mxu0 %v338
        %v378 = vpop.f32.mrf.mxu0
        %v379 = vadd.f32 0.0, %v378
        %380 = vmatmul.f32.gmra.mxu0 %v341
        %v381 = vpop.f32.mrf.mxu0
        %v382 = vadd.f32 0.0, %v381
        %383 = vmatmul.f32.gmra.mxu0 %v344
        %v384 = vpop.f32.mrf.mxu0
        %v385 = vadd.f32 0.0, %v384
        %386 = vmatmul.f32.gmra.mxu0 %v347
        %v387 = vpop.f32.mrf.mxu0
        %v388 = vadd.f32 0.0, %v387
        %389 = vmatmul.f32.gmra.mxu0 %v350
        %v390 = vpop.f32.mrf.mxu0
        %v391 = vadd.f32 0.0, %v390
        %392 = vmatmul.f32.gmra.mxu0 %v353
        %v393 = vpop.f32.mrf.mxu0
        %v394 = vadd.f32 0.0, %v393
        %395 = vdwg.mxu0
        %v396 = vld [vmem:[%s2] sm:$0xff]
        %v397 = vld [vmem:[%s2 + $0x8] sm:$0xff]
        %v398 = vld [vmem:[%s2 + $0x10] sm:$0xff]
        %v399 = vld [vmem:[%s2 + $0x18] sm:$0xff]
        %v401 = vsel %vm330, %v396, 0
        %v404 = vsel %vm330, %v397, 0
        %v407 = vsel %vm330, %v398, 0
        %v410 = vsel %vm330, %v399, 0
        %412 = vmatpush.msra.mxu0 0.0
        %413 = vmatpush.msra.mxu0 0.0
        %414 = vmatpush.msra.mxu0 0.0
        %415 = vmatpush.msra.mxu0 0.0
        %416 = vmatpush.msra.mxu0 0.0
        %417 = vmatpush.msra.mxu0 0.0
        %418 = vmatpush.msra.mxu0 0.0
        %419 = vmatpush.msra.mxu0 0.0
        %420 = vmatpush.msra.mxu0 0.0
        %421 = vmatpush.msra.mxu0 0.0
        %422 = vmatpush.msra.mxu0 0.0
        %423 = vmatpush.msra.mxu0 0.0
        %424 = vmatpush.msra.mxu0 0.0
        %425 = vmatpush.msra.mxu0 0.0
        %426 = vmatpush.msra.mxu0 %v376
        %427 = vmatpush.msra.mxu0 %v373
        %428 = vmatmul.f32.gmra.mxu0 %v401
        %v429 = vpop.f32.mrf.mxu0
        %v430 = vadd.f32 0.0, %v429
        %431 = vmatmul.f32.gmra.mxu0 %v404
        %v432 = vpop.f32.mrf.mxu0
        %v433 = vadd.f32 0.0, %v432
        %434 = vmatmul.f32.gmra.mxu0 %v407
        %v435 = vpop.f32.mrf.mxu0
        %v436 = vadd.f32 0.0, %v435
        %437 = vmatmul.f32.gmra.mxu0 %v410
        %v438 = vpop.f32.mrf.mxu0
        %v439 = vadd.f32 0.0, %v438
        %440 = vdwg.mxu0
        %s441 = scalar_lea.vmem %s2, 32
        %v442 = vld [vmem:[%s441] sm:$0xff]
        %v443 = vld [vmem:[%s441 + $0x8] sm:$0xff]
        %v444 = vld [vmem:[%s441 + $0x10] sm:$0xff]
        %v445 = vld [vmem:[%s441 + $0x18] sm:$0xff]
        %v447 = vsel %vm330, %v442, 0
        %v450 = vsel %vm330, %v443, 0
        %v453 = vsel %vm330, %v444, 0
        %v456 = vsel %vm330, %v445, 0
        %458 = vmatpush.msra.mxu0 0.0
        %459 = vmatpush.msra.mxu0 0.0
        %460 = vmatpush.msra.mxu0 0.0
        %461 = vmatpush.msra.mxu0 0.0
        %462 = vmatpush.msra.mxu0 0.0
        %463 = vmatpush.msra.mxu0 0.0
        %464 = vmatpush.msra.mxu0 0.0
        %465 = vmatpush.msra.mxu0 0.0
        %466 = vmatpush.msra.mxu0 0.0
        %467 = vmatpush.msra.mxu0 0.0
        %468 = vmatpush.msra.mxu0 0.0
        %469 = vmatpush.msra.mxu0 0.0
        %470 = vmatpush.msra.mxu0 0.0
        %471 = vmatpush.msra.mxu0 0.0
        %472 = vmatpush.msra.mxu0 %v376
        %473 = vmatpush.msra.mxu0 %v373
        %474 = vmatmul.f32.gmra.mxu0 %v447
        %v475 = vpop.f32.mrf.mxu0
        %v476 = vadd.f32 0.0, %v475
        %477 = vmatmul.f32.gmra.mxu0 %v450
        %v478 = vpop.f32.mrf.mxu0
        %v479 = vadd.f32 0.0, %v478
        %480 = vmatmul.f32.gmra.mxu0 %v453
        %v481 = vpop.f32.mrf.mxu0
        %v482 = vadd.f32 0.0, %v481
        %483 = vmatmul.f32.gmra.mxu0 %v456
        %v484 = vpop.f32.mrf.mxu0
        %v485 = vadd.f32 0.0, %v484
        %486 = vdwg.mxu0
        %491 = vrot.lane.b32.xlu0 %v476, 64
        %v492 = vpop.permute.xlu0 %491
        %493 = vrot.lane.b32.xlu0 %v479, 64
        %v494 = vpop.permute.xlu0 %493
        %495 = vrot.lane.b32.xlu0 %v482, 64
        %v496 = vpop.permute.xlu0 %495
        %497 = vrot.lane.b32.xlu0 %v485, 64
        %v498 = vpop.permute.xlu0 %497
        %vm503 = vcmask 523264
        %v504 = vsel %vm503, %v430, %v492
        %v505 = vsel %vm503, %v433, %v494
        %v506 = vsel %vm503, %v436, %v496
        %v507 = vsel %vm503, %v439, %v498
        %508 = vst [vmem:[%s231] sm:$0xff] %v504
        %509 = vst [vmem:[%s231 + $0x8] sm:$0xff] %v505
        %510 = vst [vmem:[%s231 + $0x10] sm:$0xff] %v506
        %511 = vst [vmem:[%s231 + $0x18] sm:$0xff] %v507
        %v512 = vld [vmem:[%s2] sm:$0xff]
        %v513 = vld [vmem:[%s2 + $0x8] sm:$0xff]
        %v514 = vld [vmem:[%s2 + $0x10] sm:$0xff]
        %v515 = vld [vmem:[%s2 + $0x18] sm:$0xff]
        %v517 = vsel %vm330, %v512, 0
        %v520 = vsel %vm330, %v513, 0
        %v523 = vsel %vm330, %v514, 0
        %v526 = vsel %vm330, %v515, 0
        %528 = vmatpush.msra.mxu0 0.0
        %529 = vmatpush.msra.mxu0 0.0
        %530 = vmatpush.msra.mxu0 0.0
        %531 = vmatpush.msra.mxu0 0.0
        %532 = vmatpush.msra.mxu0 0.0
        %533 = vmatpush.msra.mxu0 0.0
        %534 = vmatpush.msra.mxu0 0.0
        %535 = vmatpush.msra.mxu0 0.0
        %536 = vmatpush.msra.mxu0 0.0
        %537 = vmatpush.msra.mxu0 0.0
        %538 = vmatpush.msra.mxu0 0.0
        %539 = vmatpush.msra.mxu0 0.0
        %540 = vmatpush.msra.mxu0 0.0
        %541 = vmatpush.msra.mxu0 0.0
        %542 = vmatpush.msra.mxu0 %v382
        %543 = vmatpush.msra.mxu0 %v379
        %544 = vmatmul.f32.gmra.mxu0 %v517
        %v545 = vpop.f32.mrf.mxu0
        %v546 = vadd.f32 0.0, %v545
        %547 = vmatmul.f32.gmra.mxu0 %v520
        %v548 = vpop.f32.mrf.mxu0
        %v549 = vadd.f32 0.0, %v548
        %550 = vmatmul.f32.gmra.mxu0 %v523
        %v551 = vpop.f32.mrf.mxu0
        %v552 = vadd.f32 0.0, %v551
        %553 = vmatmul.f32.gmra.mxu0 %v526
        %v554 = vpop.f32.mrf.mxu0
        %v555 = vadd.f32 0.0, %v554
        %556 = vdwg.mxu0
        %v557 = vld [vmem:[%s441] sm:$0xff]
        %v558 = vld [vmem:[%s441 + $0x8] sm:$0xff]
        %v559 = vld [vmem:[%s441 + $0x10] sm:$0xff]
        %v560 = vld [vmem:[%s441 + $0x18] sm:$0xff]
        %v562 = vsel %vm330, %v557, 0
        %v565 = vsel %vm330, %v558, 0
        %v568 = vsel %vm330, %v559, 0
        %v571 = vsel %vm330, %v560, 0
        %573 = vmatpush.msra.mxu0 0.0
        %574 = vmatpush.msra.mxu0 0.0
        %575 = vmatpush.msra.mxu0 0.0
        %576 = vmatpush.msra.mxu0 0.0
        %577 = vmatpush.msra.mxu0 0.0
        %578 = vmatpush.msra.mxu0 0.0
        %579 = vmatpush.msra.mxu0 0.0
        %580 = vmatpush.msra.mxu0 0.0
        %581 = vmatpush.msra.mxu0 0.0
        %582 = vmatpush.msra.mxu0 0.0
        %583 = vmatpush.msra.mxu0 0.0
        %584 = vmatpush.msra.mxu0 0.0
        %585 = vmatpush.msra.mxu0 0.0
        %586 = vmatpush.msra.mxu0 0.0
        %587 = vmatpush.msra.mxu0 %v382
        %588 = vmatpush.msra.mxu0 %v379
        %589 = vmatmul.f32.gmra.mxu0 %v562
        %v590 = vpop.f32.mrf.mxu0
        %v591 = vadd.f32 0.0, %v590
        %592 = vmatmul.f32.gmra.mxu0 %v565
        %v593 = vpop.f32.mrf.mxu0
        %v594 = vadd.f32 0.0, %v593
        %595 = vmatmul.f32.gmra.mxu0 %v568
        %v596 = vpop.f32.mrf.mxu0
        %v597 = vadd.f32 0.0, %v596
        %598 = vmatmul.f32.gmra.mxu0 %v571
        %v599 = vpop.f32.mrf.mxu0
        %v600 = vadd.f32 0.0, %v599
        %601 = vdwg.mxu0
        %606 = vrot.lane.b32.xlu0 %v591, 64
        %v607 = vpop.permute.xlu0 %606
        %608 = vrot.lane.b32.xlu0 %v594, 64
        %v609 = vpop.permute.xlu0 %608
        %610 = vrot.lane.b32.xlu0 %v597, 64
        %v611 = vpop.permute.xlu0 %610
        %612 = vrot.lane.b32.xlu0 %v600, 64
        %v613 = vpop.permute.xlu0 %612
        %v618 = vsel %vm503, %v546, %v607
        %v619 = vsel %vm503, %v549, %v609
        %v620 = vsel %vm503, %v552, %v611
        %v621 = vsel %vm503, %v555, %v613
        %s622 = scalar_lea.vmem %s231, 32 [#allocation7]
        %623 = vst [vmem:[%s622] sm:$0xff] %v618
        %624 = vst [vmem:[%s622 + $0x8] sm:$0xff] %v619
        %625 = vst [vmem:[%s622 + $0x10] sm:$0xff] %v620
        %626 = vst [vmem:[%s622 + $0x18] sm:$0xff] %v621
        %v627 = vld [vmem:[%s2] sm:$0xff]
        %v628 = vld [vmem:[%s2 + $0x8] sm:$0xff]
        %v629 = vld [vmem:[%s2 + $0x10] sm:$0xff]
        %v630 = vld [vmem:[%s2 + $0x18] sm:$0xff]
        %v632 = vsel %vm330, %v627, 0
        %v635 = vsel %vm330, %v628, 0
        %v638 = vsel %vm330, %v629, 0
        %v641 = vsel %vm330, %v630, 0
        %643 = vmatpush.msra.mxu0 0.0
        %644 = vmatpush.msra.mxu0 0.0
        %645 = vmatpush.msra.mxu0 0.0
        %646 = vmatpush.msra.mxu0 0.0
        %647 = vmatpush.msra.mxu0 0.0
        %648 = vmatpush.msra.mxu0 0.0
        %649 = vmatpush.msra.mxu0 0.0
        %650 = vmatpush.msra.mxu0 0.0
        %651 = vmatpush.msra.mxu0 0.0
        %652 = vmatpush.msra.mxu0 0.0
        %653 = vmatpush.msra.mxu0 0.0
        %654 = vmatpush.msra.mxu0 0.0
        %655 = vmatpush.msra.mxu0 0.0
        %656 = vmatpush.msra.mxu0 0.0
        %657 = vmatpush.msra.mxu0 %v388
        %658 = vmatpush.msra.mxu0 %v385
        %659 = vmatmul.f32.gmra.mxu0 %v632
        %v660 = vpop.f32.mrf.mxu0
        %v661 = vadd.f32 0.0, %v660
        %662 = vmatmul.f32.gmra.mxu0 %v635
        %v663 = vpop.f32.mrf.mxu0
        %v664 = vadd.f32 0.0, %v663
        %665 = vmatmul.f32.gmra.mxu0 %v638
        %v666 = vpop.f32.mrf.mxu0
        %v667 = vadd.f32 0.0, %v666
        %668 = vmatmul.f32.gmra.mxu0 %v641
        %v669 = vpop.f32.mrf.mxu0
        %v670 = vadd.f32 0.0, %v669
        %671 = vdwg.mxu0
        %v672 = vld [vmem:[%s441] sm:$0xff]
        %v673 = vld [vmem:[%s441 + $0x8] sm:$0xff]
        %v674 = vld [vmem:[%s441 + $0x10] sm:$0xff]
        %v675 = vld [vmem:[%s441 + $0x18] sm:$0xff]
        %v677 = vsel %vm330, %v672, 0
        %v680 = vsel %vm330, %v673, 0
        %v683 = vsel %vm330, %v674, 0
        %v686 = vsel %vm330, %v675, 0
        %688 = vmatpush.msra.mxu0 0.0
        %689 = vmatpush.msra.mxu0 0.0
        %690 = vmatpush.msra.mxu0 0.0
        %691 = vmatpush.msra.mxu0 0.0
        %692 = vmatpush.msra.mxu0 0.0
        %693 = vmatpush.msra.mxu0 0.0
        %694 = vmatpush.msra.mxu0 0.0
        %695 = vmatpush.msra.mxu0 0.0
        %696 = vmatpush.msra.mxu0 0.0
        %697 = vmatpush.msra.mxu0 0.0
        %698 = vmatpush.msra.mxu0 0.0
        %699 = vmatpush.msra.mxu0 0.0
        %700 = vmatpush.msra.mxu0 0.0
        %701 = vmatpush.msra.mxu0 0.0
        %702 = vmatpush.msra.mxu0 %v388
        %703 = vmatpush.msra.mxu0 %v385
        %704 = vmatmul.f32.gmra.mxu0 %v677
        %v705 = vpop.f32.mrf.mxu0
        %v706 = vadd.f32 0.0, %v705
        %707 = vmatmul.f32.gmra.mxu0 %v680
        %v708 = vpop.f32.mrf.mxu0
        %v709 = vadd.f32 0.0, %v708
        %710 = vmatmul.f32.gmra.mxu0 %v683
        %v711 = vpop.f32.mrf.mxu0
        %v712 = vadd.f32 0.0, %v711
        %713 = vmatmul.f32.gmra.mxu0 %v686
        %v714 = vpop.f32.mrf.mxu0
        %v715 = vadd.f32 0.0, %v714
        %716 = vdwg.mxu0
        %721 = vrot.lane.b32.xlu0 %v706, 64
        %v722 = vpop.permute.xlu0 %721
        %723 = vrot.lane.b32.xlu0 %v709, 64
        %v724 = vpop.permute.xlu0 %723
        %725 = vrot.lane.b32.xlu0 %v712, 64
        %v726 = vpop.permute.xlu0 %725
        %727 = vrot.lane.b32.xlu0 %v715, 64
        %v728 = vpop.permute.xlu0 %727
        %v733 = vsel %vm503, %v661, %v722
        %v734 = vsel %vm503, %v664, %v724
        %v735 = vsel %vm503, %v667, %v726
        %v736 = vsel %vm503, %v670, %v728
        %s737 = scalar_lea.vmem %s231, 64 [#allocation7]
        %738 = vst [vmem:[%s737] sm:$0xff] %v733
        %739 = vst [vmem:[%s737 + $0x8] sm:$0xff] %v734
        %740 = vst [vmem:[%s737 + $0x10] sm:$0xff] %v735
        %741 = vst [vmem:[%s737 + $0x18] sm:$0xff] %v736
        %v742 = vld [vmem:[%s2] sm:$0xff]
        %v743 = vld [vmem:[%s2 + $0x8] sm:$0xff]
        %v744 = vld [vmem:[%s2 + $0x10] sm:$0xff]
        %v745 = vld [vmem:[%s2 + $0x18] sm:$0xff]
        %v747 = vsel %vm330, %v742, 0
        %v750 = vsel %vm330, %v743, 0
        %v753 = vsel %vm330, %v744, 0
        %v756 = vsel %vm330, %v745, 0
        %758 = vmatpush.msra.mxu0 0.0
        %759 = vmatpush.msra.mxu0 0.0
        %760 = vmatpush.msra.mxu0 0.0
        %761 = vmatpush.msra.mxu0 0.0
        %762 = vmatpush.msra.mxu0 0.0
        %763 = vmatpush.msra.mxu0 0.0
        %764 = vmatpush.msra.mxu0 0.0
        %765 = vmatpush.msra.mxu0 0.0
        %766 = vmatpush.msra.mxu0 0.0
        %767 = vmatpush.msra.mxu0 0.0
        %768 = vmatpush.msra.mxu0 0.0
        %769 = vmatpush.msra.mxu0 0.0
        %770 = vmatpush.msra.mxu0 0.0
        %771 = vmatpush.msra.mxu0 0.0
        %772 = vmatpush.msra.mxu0 %v394
        %773 = vmatpush.msra.mxu0 %v391
        %774 = vmatmul.f32.gmra.mxu0 %v747
        %v775 = vpop.f32.mrf.mxu0
        %v776 = vadd.f32 0.0, %v775
        %777 = vmatmul.f32.gmra.mxu0 %v750
        %v778 = vpop.f32.mrf.mxu0
        %v779 = vadd.f32 0.0, %v778
        %780 = vmatmul.f32.gmra.mxu0 %v753
        %v781 = vpop.f32.mrf.mxu0
        %v782 = vadd.f32 0.0, %v781
        %783 = vmatmul.f32.gmra.mxu0 %v756
        %v784 = vpop.f32.mrf.mxu0
        %v785 = vadd.f32 0.0, %v784
        %786 = vdwg.mxu0
        %v787 = vld [vmem:[%s441] sm:$0xff]
        %v788 = vld [vmem:[%s441 + $0x8] sm:$0xff]
        %v789 = vld [vmem:[%s441 + $0x10] sm:$0xff]
        %v790 = vld [vmem:[%s441 + $0x18] sm:$0xff]
        %v792 = vsel %vm330, %v787, 0
        %v795 = vsel %vm330, %v788, 0
        %v798 = vsel %vm330, %v789, 0
        %v801 = vsel %vm330, %v790, 0
        %803 = vmatpush.msra.mxu0 0.0
        %804 = vmatpush.msra.mxu0 0.0
        %805 = vmatpush.msra.mxu0 0.0
        %806 = vmatpush.msra.mxu0 0.0
        %807 = vmatpush.msra.mxu0 0.0
        %808 = vmatpush.msra.mxu0 0.0
        %809 = vmatpush.msra.mxu0 0.0
        %810 = vmatpush.msra.mxu0 0.0
        %811 = vmatpush.msra.mxu0 0.0
        %812 = vmatpush.msra.mxu0 0.0
        %813 = vmatpush.msra.mxu0 0.0
        %814 = vmatpush.msra.mxu0 0.0
        %815 = vmatpush.msra.mxu0 0.0
        %816 = vmatpush.msra.mxu0 0.0
        %817 = vmatpush.msra.mxu0 %v394
        %818 = vmatpush.msra.mxu0 %v391
        %819 = vmatmul.f32.gmra.mxu0 %v792
        %v820 = vpop.f32.mrf.mxu0
        %v821 = vadd.f32 0.0, %v820
        %822 = vmatmul.f32.gmra.mxu0 %v795
        %v823 = vpop.f32.mrf.mxu0
        %v824 = vadd.f32 0.0, %v823
        %825 = vmatmul.f32.gmra.mxu0 %v798
        %v826 = vpop.f32.mrf.mxu0
        %v827 = vadd.f32 0.0, %v826
        %828 = vmatmul.f32.gmra.mxu0 %v801
        %v829 = vpop.f32.mrf.mxu0
        %v830 = vadd.f32 0.0, %v829
        %831 = vdwg.mxu0
        %836 = vrot.lane.b32.xlu0 %v821, 64
        %v837 = vpop.permute.xlu0 %836
        %838 = vrot.lane.b32.xlu0 %v824, 64
        %v839 = vpop.permute.xlu0 %838
        %840 = vrot.lane.b32.xlu0 %v827, 64
        %v841 = vpop.permute.xlu0 %840
        %842 = vrot.lane.b32.xlu0 %v830, 64
        %v843 = vpop.permute.xlu0 %842
        %v848 = vsel %vm503, %v776, %v837
        %v849 = vsel %vm503, %v779, %v839
        %v850 = vsel %vm503, %v782, %v841
        %v851 = vsel %vm503, %v785, %v843
        %s852 = scalar_lea.vmem %s231, 96 [#allocation7]
        %853 = vst [vmem:[%s852] sm:$0xff] %v848
        %854 = vst [vmem:[%s852 + $0x8] sm:$0xff] %v849
        %855 = vst [vmem:[%s852 + $0x10] sm:$0xff] %v850
        %856 = vst [vmem:[%s852 + $0x18] sm:$0xff] %v851
        %s857 = sand.u32 %s119, 1
        %s858 = scalar_lea.sflag [#allocation4], %s857
        %s859 = sand.u32 %s119, 1
        %s860 = smul.addr %s859, 128
        %s861 = scalar_lea.vmem [#allocation7], %s860
        // Predicated region
        $region45: #{tpu_custom_call.1} parent=35 // pred_check
          %p862 = pneg %p129
        $region46: #{tpu_custom_call.1} parent=35 // pred_check_branch
          %864 = sbr.rel (%p862) target = $region48
        $region47: #{tpu_custom_call.1} parent=35 // pred_region
          %866 = vsyncadd %s858, 0
          %s867 = smul.addr %s22, 16
          %s868 = smul.addr %s867, 8
          %s869 = scalar_lea.hbm %s4, %s868
          %s870 = sshll.u32 %s861, 4
          %s871 = int_to_ptr.vmem [resolvable:$true] %s870
          %s872 = sshll.u32 %s869, 4
          %s873 = int_to_ptr.hbm [resolvable:$true] %s872
          %878 = dma.vmem_to_hbm [thread:$0]  %s871, 2048, %s873, %s858, 128, 128, 8
        $region48: #{tpu_custom_call.1} parent=35 // pred_fallthru
          _
      $region36: #{tpu_custom_call.1} parent=5 // pred_fallthru
        _
      %p879 = scmp.le.s32.totalorder 2, %s17
      // Predicated region
      $region49: #{tpu_custom_call.1} parent=5 // pred_check
        %p880 = pneg %p879
      $region50: #{tpu_custom_call.1} parent=5 // pred_check_branch
        %882 = sbr.rel (%p880) target = $region52
      $region51: #{tpu_custom_call.1} parent=5 // pred_region
        %s883 = ssub.s32 %s17, 2
        // Predicated region
        $region53: #{tpu_custom_call.1} parent=51 // pred_check
          %p884 = pneg %p135
        $region54: #{tpu_custom_call.1} parent=51 // pred_check_branch
          %886 = sbr.rel (%p884) target = $region56
        $region55: #{tpu_custom_call.1} parent=51 // pred_region
          %s887 = sand.u32 %s120, 1
          %s888 = scalar_lea.sflag [#allocation4], %s887
          %s889 = sand.u32 %s120, 1
          %s890 = smul.addr %s889, 128
          %s891 = scalar_lea.vmem [#allocation7], %s890
          %893 = dma.done %s888, 2048
        $region56: #{tpu_custom_call.1} parent=51 // pred_fallthru
          _
      $region52: #{tpu_custom_call.1} parent=5 // pred_fallthru
        _
    $region6: #{tpu_custom_call.1} parent=1 // loop_footer
      %s21 = sadd.s32 1, %s17
    $region7: #{tpu_custom_call.1} parent=1 // loop_footer_branch
      %16 = sbr.rel target = $region3
    $region8: #{tpu_custom_call.1} parent=1 // loop_exit
      _
    %894 = vsyncpa [#allocation3], 1
    %s895 = scalar_lea.sflag [#allocation3], 1
    %896 = vsyncpa %s895, 1
    %897 = vsyncpa [#allocation4], 1
    %s898 = scalar_lea.sflag [#allocation4], 1
    %899 = vsyncpa %s898, 1
    %900 = vsyncpa [#allocation5], 1
    %s901 = scalar_lea.sflag [#allocation5], 1
    %902 = vsyncpa %s901, 1

</llo_original>
